<compile_context>
chip_gen: v5e
topology: v5e:2x2
jax: 0.10.0
libtpu: 0.0.40
codegen_flags: <defaults>
</compile_context>

<pallas_src>
import functools

import jax
import jax.numpy as jnp
from jax import lax
from jax.experimental import pallas as pl
from jax.experimental.pallas import tpu as pltpu


# ---------------------------------------------------------------------------
# Kernel
# ---------------------------------------------------------------------------
def _ffn_gelu_kernel(x_ref, w1_ref, b1_ref, w2_ref, ws_ref, bcat_ref, o_ref, *,
                     approximate_gelu):
    # x_ref: (1, Cin, TN) -- channels on sublanes, pixels on the 128-lane axis.
    x = x_ref[0]                                   # (Cin, TN)
    xb = x.astype(jnp.bfloat16)

    # conv1 (BatchNorm #1 folded into w1/b1); bf16 MXU operands, f32 accumulation.
    h = jnp.dot(w1_ref[...], xb, preferred_element_type=jnp.float32) + b1_ref[...]

    if approximate_gelu:
        # tanh-approx GELU: transcendental runs on the EUP (separate VLIW slot)
        # instead of expanding erf into a long VALU polynomial.
        h = 0.5 * h * (1.0 + jnp.tanh(0.7978845608028654 * (h + 0.044715 * h * h * h)))
    else:
        # exact erf GELU (torch.nn.GELU() default)
        h = 0.5 * h * (1.0 + lax.erf(h * 0.7071067811865476))

    # conv2 + skip projection as TWO dots (BatchNorm #2 / skip BatchNorm folded
    # into the weights). No concat -> no extra (Chid+Cin, TN) VMEM copy per step.
    out = jnp.dot(w2_ref[...], h.astype(jnp.bfloat16),
                  preferred_element_type=jnp.float32)
    out = out + jnp.dot(ws_ref[...], xb, preferred_element_type=jnp.float32)
    out = out + bcat_ref[...]
    o_ref[0] = out.astype(o_ref.dtype)


# ---------------------------------------------------------------------------
# Tiling helpers
# ---------------------------------------------------------------------------
def _round_up(x, m):
    return (x + m - 1) // m * m


def _vmem_budget():
    """Return (activation-tile budget, scoped vmem limit), generation aware."""
    try:
        cap = int(pltpu.get_tpu_info().vmem_capacity_bytes)
    except Exception:
        cap = 64 * 2**20                 # assume the smallest (v7x-like) part
    if cap >= 100 * 2**20:               # v5e / v6e: 128 MiB physical VMEM
        return 20 * 2**20, 96 * 2**20
    return 8 * 2**20, 32 * 2**20         # v7x: 64 MiB physical, 32 MiB scoped


def _choose_spatial_tile(hw, c_in, c_hid, c_out, in_bytes, out_bytes, batch,
                         vmem_budget_bytes, *, tn_cap=16384):
    """Largest lane-aligned spatial tile that fits the VMEM budget.

    The grid uses pl.cdiv, so tn does NOT have to divide hw: the last block is
    a partial (clipped) block instead of collapsing tn down to a small divisor.
    """
    # Resident weights/biases (bf16 weights, f32 bias columns); counted twice
    # in case Mosaic double-buffers the constant-index blocks.
    weight_bytes = 2 * (2 * (c_hid * c_in + c_out * c_hid + c_out * c_in)
                        + 4 * (c_hid + c_out))
    avail = max(vmem_budget_bytes - weight_bytes, 1 << 19)

    # Live bytes per lane column: double-buffered x/out tiles, bf16 x copy,
    # f32 hidden + bf16 hidden copy, f32 output accumulator.
    per_col = (2 * c_in * in_bytes + 2 * c_out * out_bytes
               + 2 * c_in + 6 * c_hid + 4 * c_out)

    tn = (avail // per_col) // 128 * 128
    tn = max(128, min(tn, tn_cap, _round_up(hw, 128)))

    # Keep >= 2 grid steps so both v7x TensorCores get work ("parallel" axes).
    if batch * pl.cdiv(hw, tn) < 2 and tn > 128:
        tn = max(128, (tn // 2) // 128 * 128)

    if hw < 128:          # block must be a multiple of 128 or the full extent
        tn = hw
    return tn


# ---------------------------------------------------------------------------
# Wrapper
# ---------------------------------------------------------------------------
def feed_forward_gelu(x_nchw, params, *, out_dtype=None, approximate_gelu=True,
                      interpret=False):
    """Fused FeedForwardGELU forward on an NCHW input using folded/bf16 params.

    Accepts f32 or bf16 input; pass bf16 input (and bf16 out_dtype) when the
    surrounding graph allows -- the kernel is HBM-bandwidth bound and halving
    the activation streams is the dominant lever.
    """
    B, Cin, H, W = x_nchw.shape
    chid = params["w1"].shape[0]
    cout = params["w2"].shape[0]
    out_dtype = x_nchw.dtype if out_dtype is None else out_dtype

    HW = H * W
    x3 = x_nchw.reshape(B, Cin, HW)   # free contiguous reshape; no transpose/pad

    budget, vmem_limit = _vmem_budget()
    tn = _choose_spatial_tile(HW, Cin, chid, cout,
                              jnp.dtype(x_nchw.dtype).itemsize,
                              jnp.dtype(out_dtype).itemsize,
                              B, budget)
    grid = (B, pl.cdiv(HW, tn))       # last spatial block may be partial (clipped)

    out = pl.pallas_call(
        functools.partial(_ffn_gelu_kernel, approximate_gelu=approximate_gelu),
        out_shape=jax.ShapeDtypeStruct((B, cout, HW), out_dtype),
        grid=grid,
        in_specs=[
            pl.BlockSpec((1, Cin, tn), lambda b, s: (b, 0, s)),   # x tile
            # weights / biases: constant block index -> DMA'd once, kept resident
            pl.BlockSpec((chid, Cin), lambda b, s: (0, 0)),       # W1'      (bf16)
            pl.BlockSpec((chid, 1), lambda b, s: (0, 0)),         # b1'      (f32)
            pl.BlockSpec((cout, chid), lambda b, s: (0, 0)),      # W2'      (bf16)
            pl.BlockSpec((cout, Cin), lambda b, s: (0, 0)),       # Ws'      (bf16)
            pl.BlockSpec((cout, 1), lambda b, s: (0, 0)),         # b2'+bs'  (f32)
        ],
        out_specs=pl.BlockSpec((1, cout, tn), lambda b, s: (b, 0, s)),
        compiler_params=pltpu.CompilerParams(
            dimension_semantics=("parallel", "parallel"),
            vmem_limit_bytes=vmem_limit,
        ),
        interpret=interpret,
    )(x3, params["w1"], params["b1"], params["w2"], params["ws"], params["bcat"])

    return out.reshape(B, cout, H, W)


# ---------------------------------------------------------------------------
# Parameter construction / BatchNorm folding
# ---------------------------------------------------------------------------
def make_raw_params(key, channels_in, channels_out, channel_multiplier):
    """Deterministic synthetic parameters matching the torch module's shapes."""
    chid = channel_multiplier * channels_in
    ks = jax.random.split(key, 9)
    f32 = jnp.float32

    def bn(k, c):
        k1, k2, k3 = jax.random.split(k, 3)
        return dict(gamma=1.0 + 0.1 * jax.random.normal(k1, (c,), f32),
                    beta=0.1 * jax.random.normal(k2, (c,), f32),
                    mean=0.1 * jax.random.normal(k3, (c,), f32),
                    var=jnp.full((c,), 0.9, f32))

    return dict(
        w1=0.1 * jax.random.normal(ks[0], (chid, channels_in), f32),          # (out,in)
        b1=0.1 * jax.random.normal(ks[1], (chid,), f32),
        w2=0.1 * jax.random.normal(ks[2], (channels_out, chid), f32),
        b2=0.1 * jax.random.normal(ks[3], (channels_out,), f32),
        ws=0.1 * jax.random.normal(ks[4], (channels_out, channels_in), f32),
        bs=0.1 * jax.random.normal(ks[5], (channels_out,), f32),
        bn1=bn(ks[6], channels_in),
        bn2=bn(ks[7], chid),
        bns=bn(ks[8], channels_in),
    )


def fold_params(raw, *, weight_dtype=jnp.bfloat16, eps=1e-5):
    """Fold the 3 BatchNorms into the conv weights/biases.

    Covers the has_skip=True projection path (channels_in != channels_out).
    For has_skip=False pass ws=0/bs=0; for an identity skip pass ws=I/bs=0.
    """
    def fold(p):
        s = p["gamma"] / jnp.sqrt(p["var"] + eps)
        return s, p["beta"] - p["mean"] * s

    s1, t1 = fold(raw["bn1"])
    s2, t2 = fold(raw["bn2"])
    ss, ts = fold(raw["bns"])

    w1f = raw["w1"] * s1[None, :]            # (Chid, Cin)
    b1f = raw["w1"] @ t1 + raw["b1"]         # (Chid,)
    w2f = raw["w2"] * s2[None, :]            # (Cout, Chid)
    b2f = raw["w2"] @ t2 + raw["b2"]         # (Cout,)
    wsf = raw["ws"] * ss[None, :]            # (Cout, Cin)
    bsf = raw["ws"] @ ts + raw["bs"]         # (Cout,)

    return dict(
        w1=w1f.astype(weight_dtype),
        b1=b1f[:, None].astype(jnp.float32),
        w2=w2f.astype(weight_dtype),
        ws=wsf.astype(weight_dtype),
        bcat=(b2f + bsf)[:, None].astype(jnp.float32),
    )


# ---------------------------------------------------------------------------
# References (test harness only)
# ---------------------------------------------------------------------------
def _gelu(h, approximate):
    if approximate:
        return 0.5 * h * (1.0 + jnp.tanh(0.7978845608028654 * (h + 0.044715 * h * h * h)))
    return 0.5 * h * (1.0 + lax.erf(h * 0.7071067811865476))


def _reference_module(x_nchw, raw, eps=1e-5):
    """Pure-JAX f32 reference of the torch module's (inference-mode) forward."""
    def bn(x, p):
        return (x - p["mean"]) / jnp.sqrt(p["var"] + eps) * p["gamma"] + p["beta"]

    B, Cin, H, W = x_nchw.shape
    x = jnp.transpose(x_nchw, (0, 2, 3, 1)).reshape(-1, Cin)
    h = bn(x, raw["bn1"]) @ raw["w1"].T + raw["b1"]
    h = _gelu(h, approximate=False)          # torch.nn.GELU() default (exact erf)
    ffn = bn(h, raw["bn2"]) @ raw["w2"].T + raw["b2"]
    skip = bn(x, raw["bns"]) @ raw["ws"].T + raw["bs"]
    out = (ffn + skip).reshape(B, H, W, -1)
    return jnp.transpose(out, (0, 3, 1, 2))


def _reference_folded(x_nchw, kp, approximate_gelu=True):
    """Pure-JAX reference of the exact kernel math (folded BN, bf16 dots)."""
    B, Cin, H, W = x_nchw.shape
    xb = x_nchw.reshape(B, Cin, H * W).astype(jnp.bfloat16)
    h = jnp.einsum("hc,bcn->bhn", kp["w1"], xb,
                   preferred_element_type=jnp.float32) + kp["b1"][None]
    h = _gelu(h, approximate_gelu)
    out = jnp.einsum("oc,bcn->bon", kp["w2"], h.astype(jnp.bfloat16),
                     preferred_element_type=jnp.float32)
    out = out + jnp.einsum("oc,bcn->bon", kp["ws"], xb,
                           preferred_element_type=jnp.float32)
    out = out + kp["bcat"][None]
    return out.reshape(B, -1, H, W)


# ---------------------------------------------------------------------------
if __name__ == "__main__":
    B, Cin, H, W = 2, 4, 16, 16
    Cout, mult = 8, 4            # channels_in != channels_out -> skip_projection path
    key = jax.random.PRNGKey(0)
    kx, kp = jax.random.split(key)

    x = jax.random.normal(kx, (B, Cin, H, W), jnp.float32)
    raw = make_raw_params(kp, Cin, Cout, mult)
    params = fold_params(raw)

    out = feed_forward_gelu(x, params)
    out = jax.block_until_ready(out)
    assert out.shape == (B, Cout, H, W)

    # Tight check against a pure-JAX implementation of the exact kernel math.
    ref_folded = _reference_folded(x, params)
    assert jnp.allclose(out, ref_folded, atol=2e-3, rtol=2e-3), "mismatch vs folded reference"

    # Fidelity check against the full-f32, unfolded module semantics
    # (bf16 weights + tanh-approx GELU introduce ~0.3% relative error).
    ref_full = _reference_module(x, raw)
    assert jnp.allclose(out, ref_full, atol=2e-2, rtol=2e-2), "mismatch vs module reference"

    # bf16 activation-I/O path (halves HBM traffic on this BW-bound kernel).
    out_bf16 = jax.block_until_ready(
        feed_forward_gelu(x.astype(jnp.bfloat16), params, out_dtype=jnp.bfloat16))
    assert out_bf16.shape == (B, Cout, H, W) and out_bf16.dtype == jnp.bfloat16
    assert jnp.allclose(out_bf16.astype(jnp.float32), ref_full, atol=5e-2, rtol=5e-2), \
        "mismatch vs module reference (bf16 I/O)"

    print("KERNEL_OK")
</pallas_src>

<mosaic_0001>
module attributes {stable_mosaic.version = 11 : i64} {
  func.func @_ffn_gelu_kernel(%arg0: i32, %arg1: i32, %arg2: memref<1x4x256xf32, #tpu.memory_space<vmem>>, %arg3: memref<16x4xbf16, #tpu.memory_space<vmem>>, %arg4: memref<16x1xf32, #tpu.memory_space<vmem>>, %arg5: memref<8x16xbf16, #tpu.memory_space<vmem>>, %arg6: memref<8x4xbf16, #tpu.memory_space<vmem>>, %arg7: memref<8x1xf32, #tpu.memory_space<vmem>>, %arg8: memref<1x8x256xf32, #tpu.memory_space<vmem>>) attributes {dimension_semantics = [#tpu.dimension_semantics<parallel>, #tpu.dimension_semantics<parallel>], iteration_bounds = array<i64: 2, 1>, scalar_prefetch = 0 : i64, scratch_operands = 0 : i64, tpu.core_type = #tpu.core_type<tc>, window_params = [{transform_indices = @transform_0, window_bounds = array<i64: 1, 4, 256>}, {pipeline_mode = #tpu.pipeline_mode<synchronous>, transform_indices = @transform_1, window_bounds = array<i64: 16, 4>}, {pipeline_mode = #tpu.pipeline_mode<synchronous>, transform_indices = @transform_2, window_bounds = array<i64: 16, 1>}, {pipeline_mode = #tpu.pipeline_mode<synchronous>, transform_indices = @transform_3, window_bounds = array<i64: 8, 16>}, {pipeline_mode = #tpu.pipeline_mode<synchronous>, transform_indices = @transform_4, window_bounds = array<i64: 8, 4>}, {pipeline_mode = #tpu.pipeline_mode<synchronous>, transform_indices = @transform_5, window_bounds = array<i64: 8, 1>}, {transform_indices = @transform_6, window_bounds = array<i64: 1, 8, 256>}]} {
    %c0 = arith.constant 0 : index
    %c0_0 = arith.constant 0 : index
    %c0_1 = arith.constant 0 : index
    %0 = vector.load %arg2[%c0, %c0_0, %c0_1] : memref<1x4x256xf32, #tpu.memory_space<vmem>>, vector<1x4x256xf32>
    %1 = vector.shape_cast %0 : vector<1x4x256xf32> to vector<4x256xf32>
    %2 = arith.truncf %1 : vector<4x256xf32> to vector<4x256xbf16>
    %c0_2 = arith.constant 0 : index
    %c0_3 = arith.constant 0 : index
    %3 = vector.load %arg3[%c0_2, %c0_3] : memref<16x4xbf16, #tpu.memory_space<vmem>>, vector<16x4xbf16>
    %cst = arith.constant dense<0.000000e+00> : vector<16x256xf32>
    %4 = tpu.matmul %3, %2, %cst {dimension_numbers = #tpu.dot_dimension_numbers<[1], [0], [0], [1], [0, 0, 1, 1], [], []>} : vector<16x4xbf16>, vector<4x256xbf16>, vector<16x256xf32> -> vector<16x256xf32>
    %c0_4 = arith.constant 0 : index
    %c0_5 = arith.constant 0 : index
    %5 = vector.load %arg4[%c0_4, %c0_5] : memref<16x1xf32, #tpu.memory_space<vmem>>, vector<16x1xf32>
    %6 = vector.broadcast %5 : vector<16x1xf32> to vector<16x256xf32>
    %7 = arith.addf %4, %6 : vector<16x256xf32>
    %cst_6 = arith.constant 5.000000e-01 : f32
    %8 = vector.broadcast %cst_6 : f32 to vector<16x256xf32>
    %9 = arith.mulf %8, %7 : vector<16x256xf32>
    %cst_7 = arith.constant 4.471500e-02 : f32
    %10 = vector.broadcast %cst_7 : f32 to vector<16x256xf32>
    %11 = arith.mulf %10, %7 : vector<16x256xf32>
    %12 = arith.mulf %11, %7 : vector<16x256xf32>
    %13 = arith.mulf %12, %7 : vector<16x256xf32>
    %14 = arith.addf %7, %13 : vector<16x256xf32>
    %cst_8 = arith.constant 0.797884583 : f32
    %15 = vector.broadcast %cst_8 : f32 to vector<16x256xf32>
    %16 = arith.mulf %15, %14 : vector<16x256xf32>
    %17 = math.tanh %16 : vector<16x256xf32>
    %cst_9 = arith.constant 1.000000e+00 : f32
    %18 = vector.broadcast %cst_9 : f32 to vector<16x256xf32>
    %19 = arith.addf %18, %17 : vector<16x256xf32>
    %20 = arith.mulf %9, %19 : vector<16x256xf32>
    %c0_10 = arith.constant 0 : index
    %c0_11 = arith.constant 0 : index
    %21 = vector.load %arg5[%c0_10, %c0_11] : memref<8x16xbf16, #tpu.memory_space<vmem>>, vector<8x16xbf16>
    %22 = arith.truncf %20 : vector<16x256xf32> to vector<16x256xbf16>
    %cst_12 = arith.constant dense<0.000000e+00> : vector<8x256xf32>
    %23 = tpu.matmul %21, %22, %cst_12 {dimension_numbers = #tpu.dot_dimension_numbers<[1], [0], [0], [1], [0, 0, 1, 1], [], []>} : vector<8x16xbf16>, vector<16x256xbf16>, vector<8x256xf32> -> vector<8x256xf32>
    %c0_13 = arith.constant 0 : index
    %c0_14 = arith.constant 0 : index
    %24 = vector.load %arg6[%c0_13, %c0_14] : memref<8x4xbf16, #tpu.memory_space<vmem>>, vector<8x4xbf16>
    %cst_15 = arith.constant dense<0.000000e+00> : vector<8x256xf32>
    %25 = tpu.matmul %24, %2, %cst_15 {dimension_numbers = #tpu.dot_dimension_numbers<[1], [0], [0], [1], [0, 0, 1, 1], [], []>} : vector<8x4xbf16>, vector<4x256xbf16>, vector<8x256xf32> -> vector<8x256xf32>
    %26 = arith.addf %23, %25 : vector<8x256xf32>
    %c0_16 = arith.constant 0 : index
    %c0_17 = arith.constant 0 : index
    %27 = vector.load %arg7[%c0_16, %c0_17] : memref<8x1xf32, #tpu.memory_space<vmem>>, vector<8x1xf32>
    %28 = vector.broadcast %27 : vector<8x1xf32> to vector<8x256xf32>
    %29 = arith.addf %26, %28 : vector<8x256xf32>
    %c0_18 = arith.constant 0 : index
    %c0_19 = arith.constant 0 : index
    %c0_20 = arith.constant 0 : index
    %30 = vector.load %arg8[%c0_18, %c0_19, %c0_20] : memref<1x8x256xf32, #tpu.memory_space<vmem>>, vector<1x8x256xf32>
    %31 = vector.shape_cast %30 : vector<1x8x256xf32> to vector<8x256xf32>
    %32 = vector.shape_cast %29 : vector<8x256xf32> to vector<1x8x256xf32>
    tpu.vector_store %arg8[%c0_18, %c0_19, %c0_20], %32 {strides = array<i32>} : memref<1x8x256xf32, #tpu.memory_space<vmem>>, vector<1x8x256xf32>,
    return
  }
  func.func @transform_0(%arg0: i32, %arg1: i32) -> (i32, i32, i32) {
    %c0_i32 = arith.constant 0 : i32
    %c0_i32_0 = arith.constant 0 : i32
    return %arg0, %c0_i32, %arg1 : i32, i32, i32
  }
  func.func @transform_1(%arg0: i32, %arg1: i32) -> (i32, i32) {
    %c0_i32 = arith.constant 0 : i32
    %c0_i32_0 = arith.constant 0 : i32
    %c0_i32_1 = arith.constant 0 : i32
    return %c0_i32, %c0_i32_0 : i32, i32
  }
  func.func @transform_2(%arg0: i32, %arg1: i32) -> (i32, i32) {
    %c0_i32 = arith.constant 0 : i32
    %c0_i32_0 = arith.constant 0 : i32
    %c0_i32_1 = arith.constant 0 : i32
    return %c0_i32, %c0_i32_0 : i32, i32
  }
  func.func @transform_3(%arg0: i32, %arg1: i32) -> (i32, i32) {
    %c0_i32 = arith.constant 0 : i32
    %c0_i32_0 = arith.constant 0 : i32
    %c0_i32_1 = arith.constant 0 : i32
    return %c0_i32, %c0_i32_0 : i32, i32
  }
  func.func @transform_4(%arg0: i32, %arg1: i32) -> (i32, i32) {
    %c0_i32 = arith.constant 0 : i32
    %c0_i32_0 = arith.constant 0 : i32
    %c0_i32_1 = arith.constant 0 : i32
    return %c0_i32, %c0_i32_0 : i32, i32
  }
  func.func @transform_5(%arg0: i32, %arg1: i32) -> (i32, i32) {
    %c0_i32 = arith.constant 0 : i32
    %c0_i32_0 = arith.constant 0 : i32
    %c0_i32_1 = arith.constant 0 : i32
    return %c0_i32, %c0_i32_0 : i32, i32
  }
  func.func @transform_6(%arg0: i32, %arg1: i32) -> (i32, i32, i32) {
    %c0_i32 = arith.constant 0 : i32
    %c0_i32_0 = arith.constant 0 : i32
    return %arg0, %c0_i32, %arg1 : i32, i32, i32
  }
}

</mosaic_0001>

<llo_original>
// kernel: tpu_custom_call.1
$region0: #{tpu_custom_call.1}
  #allocation0 [shape = 'u32[]', space=smem, size = 0x4, offset = 0x4, fixed_abs, tag = 'smem constant byte address 0x4 - core index']
  #allocation1 [shape = 'u32[72,128]{1,0:T(1,128)}', space=vmem, size = 0x9000, scoped, tag = 'internal scratch']
  %s0 = inlined_call_operand.vmem [shape: f32[2,4,256], index: 0, kind: input, shape index: {}]
  %s1 = inlined_call_operand.vmem [shape: bf16[16,4], index: 1, kind: input, shape index: {}]
  %s2 = inlined_call_operand.vmem [shape: f32[16,1], index: 2, kind: input, shape index: {}]
  %s3 = inlined_call_operand.vmem [shape: bf16[8,16], index: 3, kind: input, shape index: {}]
  %s4 = inlined_call_operand.vmem [shape: bf16[8,4], index: 4, kind: input, shape index: {}]
  %s5 = inlined_call_operand.vmem [shape: f32[8,1], index: 5, kind: input, shape index: {}]
  %s6 = inlined_call_operand.hbm [shape: f32[2,8,256], index: 6, kind: output, shape index: {}]
  %s7 = sld [smem:[#allocation0]]
  $region57: #{tpu_custom_call.1} parent=0
    _
  %s9 = ssub.s32 1, %s7
  %s10 = scalar_select 0, %s9, %s7
  $region1: #{tpu_custom_call.1} parent=0
    #allocation2 [shape = 'u8[16384]{0}', space=vmem, size = 0x4000, scoped, tag = 'output window, operand 0']
    #allocation3 [shape = 's32[2]{0}', space=sflag, size = 0x8, scoped, tag = 'scoped memory for tpu_custom_call.1']
    %11 = vsyncpa [#allocation3], 0
    %s12 = scalar_lea.sflag [#allocation3], 1
    %13 = vsyncpa %s12, 0
    loop: start=0, step=1, limit=4
    $region2: #{tpu_custom_call.1} parent=1 // loop_pre_header
      _
    $region3: #{tpu_custom_call.1} parent=1 // loop_header
      %s15 = sphi 0, %s19
      %p16 = scmp.ge.s32.totalorder %s15, 4
      %s22 = sphi 0, %s34
      %s23 = sphi 0, %s30
      %s24 = sphi 0, %s22
      %s25 = sphi 0, %s23
      %s26 = sphi 0, %s24
      %s27 = sphi 0, %s25
      %s39 = sphi 0, %s41
      %s42 = sphi 0, %s39
      %s43 = sphi 0, %s42
      %s59 = sphi 0, %s43
      %s63 = sphi 0, %s63
      %s65 = sphi 0, %s63
      %s66 = sphi 0, %s65
      %s80 = sphi 0, %s66
      %s84 = sphi 0, %s84
      %s86 = sphi 0, %s84
      %s87 = sphi 0, %s86
      %s101 = sphi 0, %s87
      %s105 = sphi 0, %s105
      %s107 = sphi 0, %s105
      %s108 = sphi 0, %s107
      %s122 = sphi 0, %s108
      %s126 = sphi 0, %s126
      %s128 = sphi 0, %s126
      %s129 = sphi 0, %s128
      %s143 = sphi 0, %s129
      %s147 = sphi 0, %s147
      %s149 = sphi 0, %s147
      %s150 = sphi 0, %s149
      %s164 = sphi 0, %s150
      %s172 = sphi 0, %s174
      %s175 = sphi 0, %s172
      %s176 = sphi 0, %s175
      %s192 = sphi 0, %s176
    $region4: #{tpu_custom_call.1} parent=1 // loop_header_branch
      %18 = sbr.rel (%p16) target = $region8
    $region5: #{tpu_custom_call.1} parent=1 // loop_body
      %s20 = ssub.s32 %s15, 1
      %s21 = ssub.s32 %s15, 2
      %s28 = sadd.s32 1, %s23
      %p29 = scmp.ge.s32.totalorder %s28, 1
      %s30 = scalar_select %p29, 0, %s28
      %s31 = sadd.s32 1, %s22
      %s32 = scalar_select %p29, %s31, %s22
      %p33 = scmp.ge.s32.totalorder %s32, 2
      %s34 = scalar_select %p33, 0, %s32
      %s35 = ssub.s32 %s22, %s34
      %s36 = ssub.s32 %s23, %s30
      %s37 = sor.u32 %s35, %s36
      %p38 = scmp.eq.s32.totalorder %s37, 0
      %s40 = sadd.s32 %s39, 1
      %s41 = scalar_select %p38, %s39, %s40
      %p44 = pneg %p38
      %p45 = scmp.eq.s32.totalorder %s15, 1
      %p46 = por %p44, %p45
      %p47 = scmp.ne.s32.totalorder %s39, %s42
      %p48 = scmp.eq.s32.totalorder %s15, 0
      %p49 = por %p47, %p48
      %p50 = scmp.ne.s32.totalorder %s39, %s42
      %p51 = scmp.eq.s32.totalorder %s20, 1
      %p52 = por %p50, %p51
      %p53 = scmp.ne.s32.totalorder %s42, %s43
      %p54 = scmp.eq.s32.totalorder %s20, 0
      %p55 = por %p53, %p54
      %p56 = scmp.ne.s32.totalorder %s42, %s43
      %p57 = scmp.eq.s32.totalorder %s21, 1
      %p58 = por %p56, %p57
      %p60 = scmp.ne.s32.totalorder %s43, %s59
      %p61 = scmp.eq.s32.totalorder %s21, 0
      %p62 = por %p60, %p61
      %s64 = sadd.s32 %s63, 1
      %p67 = scmp.eq.s32.totalorder %s15, 1
      %p68 = scmp.ne.s32.totalorder %s63, %s65
      %p69 = scmp.eq.s32.totalorder %s15, 0
      %p70 = por %p68, %p69
      %p71 = scmp.ne.s32.totalorder %s63, %s65
      %p72 = scmp.eq.s32.totalorder %s20, 1
      %p73 = por %p71, %p72
      %p74 = scmp.ne.s32.totalorder %s65, %s66
      %p75 = scmp.eq.s32.totalorder %s20, 0
      %p76 = por %p74, %p75
      %p77 = scmp.ne.s32.totalorder %s65, %s66
      %p78 = scmp.eq.s32.totalorder %s21, 1
      %p79 = por %p77, %p78
      %p81 = scmp.ne.s32.totalorder %s66, %s80
      %p82 = scmp.eq.s32.totalorder %s21, 0
      %p83 = por %p81, %p82
      %s85 = sadd.s32 %s84, 1
      %p88 = scmp.eq.s32.totalorder %s15, 1
      %p89 = scmp.ne.s32.totalorder %s84, %s86
      %p90 = scmp.eq.s32.totalorder %s15, 0
      %p91 = por %p89, %p90
      %p92 = scmp.ne.s32.totalorder %s84, %s86
      %p93 = scmp.eq.s32.totalorder %s20, 1
      %p94 = por %p92, %p93
      %p95 = scmp.ne.s32.totalorder %s86, %s87
      %p96 = scmp.eq.s32.totalorder %s20, 0
      %p97 = por %p95, %p96
      %p98 = scmp.ne.s32.totalorder %s86, %s87
      %p99 = scmp.eq.s32.totalorder %s21, 1
      %p100 = por %p98, %p99
      %p102 = scmp.ne.s32.totalorder %s87, %s101
      %p103 = scmp.eq.s32.totalorder %s21, 0
      %p104 = por %p102, %p103
      %s106 = sadd.s32 %s105, 1
      %p109 = scmp.eq.s32.totalorder %s15, 1
      %p110 = scmp.ne.s32.totalorder %s105, %s107
      %p111 = scmp.eq.s32.totalorder %s15, 0
      %p112 = por %p110, %p111
      %p113 = scmp.ne.s32.totalorder %s105, %s107
      %p114 = scmp.eq.s32.totalorder %s20, 1
      %p115 = por %p113, %p114
      %p116 = scmp.ne.s32.totalorder %s107, %s108
      %p117 = scmp.eq.s32.totalorder %s20, 0
      %p118 = por %p116, %p117
      %p119 = scmp.ne.s32.totalorder %s107, %s108
      %p120 = scmp.eq.s32.totalorder %s21, 1
      %p121 = por %p119, %p120
      %p123 = scmp.ne.s32.totalorder %s108, %s122
      %p124 = scmp.eq.s32.totalorder %s21, 0
      %p125 = por %p123, %p124
      %s127 = sadd.s32 %s126, 1
      %p130 = scmp.eq.s32.totalorder %s15, 1
      %p131 = scmp.ne.s32.totalorder %s126, %s128
      %p132 = scmp.eq.s32.totalorder %s15, 0
      %p133 = por %p131, %p132
      %p134 = scmp.ne.s32.totalorder %s126, %s128
      %p135 = scmp.eq.s32.totalorder %s20, 1
      %p136 = por %p134, %p135
      %p137 = scmp.ne.s32.totalorder %s128, %s129
      %p138 = scmp.eq.s32.totalorder %s20, 0
      %p139 = por %p137, %p138
      %p140 = scmp.ne.s32.totalorder %s128, %s129
      %p141 = scmp.eq.s32.totalorder %s21, 1
      %p142 = por %p140, %p141
      %p144 = scmp.ne.s32.totalorder %s129, %s143
      %p145 = scmp.eq.s32.totalorder %s21, 0
      %p146 = por %p144, %p145
      %s148 = sadd.s32 %s147, 1
      %p151 = scmp.eq.s32.totalorder %s15, 1
      %p152 = scmp.ne.s32.totalorder %s147, %s149
      %p153 = scmp.eq.s32.totalorder %s15, 0
      %p154 = por %p152, %p153
      %p155 = scmp.ne.s32.totalorder %s147, %s149
      %p156 = scmp.eq.s32.totalorder %s20, 1
      %p157 = por %p155, %p156
      %p158 = scmp.ne.s32.totalorder %s149, %s150
      %p159 = scmp.eq.s32.totalorder %s20, 0
      %p160 = por %p158, %p159
      %p161 = scmp.ne.s32.totalorder %s149, %s150
      %p162 = scmp.eq.s32.totalorder %s21, 1
      %p163 = por %p161, %p162
      %p165 = scmp.ne.s32.totalorder %s150, %s164
      %p166 = scmp.eq.s32.totalorder %s21, 0
      %p167 = por %p165, %p166
      %s168 = ssub.s32 %s22, %s34
      %s169 = ssub.s32 %s23, %s30
      %s170 = sor.u32 %s168, %s169
      %p171 = scmp.eq.s32.totalorder %s170, 0
      %s173 = sadd.s32 %s172, 1
      %s174 = scalar_select %p171, %s172, %s173
      %p177 = pneg %p171
      %p178 = scmp.eq.s32.totalorder %s15, 1
      %p179 = por %p177, %p178
      %p180 = scmp.ne.s32.totalorder %s172, %s175
      %p181 = scmp.eq.s32.totalorder %s15, 0
      %p182 = por %p180, %p181
      %p183 = scmp.ne.s32.totalorder %s172, %s175
      %p184 = scmp.eq.s32.totalorder %s20, 1
      %p185 = por %p183, %p184
      %p186 = scmp.ne.s32.totalorder %s175, %s176
      %p187 = scmp.eq.s32.totalorder %s20, 0
      %p188 = por %p186, %p187
      %p189 = scmp.ne.s32.totalorder %s175, %s176
      %p190 = scmp.eq.s32.totalorder %s21, 1
      %p191 = por %p189, %p190
      %p193 = scmp.ne.s32.totalorder %s176, %s192
      %p194 = scmp.eq.s32.totalorder %s21, 0
      %p195 = por %p193, %p194
      %p196 = scmp.le.s32.totalorder 1, %s15
      %p197 = scmp.lt.s32.totalorder %s15, 3
      %p198 = pnand %p196, %p197
      %p199 = pneg %p198
      // Predicated region
      $region9: #{tpu_custom_call.1} parent=5 // pred_check
        _
      $region10: #{tpu_custom_call.1} parent=5 // pred_check_branch
        %201 = sbr.rel (%p198) target = $region12
      $region11: #{tpu_custom_call.1} parent=5 // pred_region
        %s202 = ssub.s32 %s15, 1
        // Predicated region
        $region13: #{tpu_custom_call.1} parent=11 // pred_check
          %p203 = pneg %p76
        $region14: #{tpu_custom_call.1} parent=11 // pred_check_branch
          %205 = sbr.rel (%p203) target = $region16
        $region15: #{tpu_custom_call.1} parent=11 // pred_region
          _
        $region16: #{tpu_custom_call.1} parent=11 // pred_fallthru
          _
        // Predicated region
        $region17: #{tpu_custom_call.1} parent=11 // pred_check
          %p206 = pneg %p97
        $region18: #{tpu_custom_call.1} parent=11 // pred_check_branch
          %208 = sbr.rel (%p206) target = $region20
        $region19: #{tpu_custom_call.1} parent=11 // pred_region
          _
        $region20: #{tpu_custom_call.1} parent=11 // pred_fallthru
          _
        // Predicated region
        $region21: #{tpu_custom_call.1} parent=11 // pred_check
          %p209 = pneg %p118
        $region22: #{tpu_custom_call.1} parent=11 // pred_check_branch
          %211 = sbr.rel (%p209) target = $region24
        $region23: #{tpu_custom_call.1} parent=11 // pred_region
          _
        $region24: #{tpu_custom_call.1} parent=11 // pred_fallthru
          _
        // Predicated region
        $region25: #{tpu_custom_call.1} parent=11 // pred_check
          %p212 = pneg %p139
        $region26: #{tpu_custom_call.1} parent=11 // pred_check_branch
          %214 = sbr.rel (%p212) target = $region28
        $region27: #{tpu_custom_call.1} parent=11 // pred_region
          _
        $region28: #{tpu_custom_call.1} parent=11 // pred_fallthru
          _
        // Predicated region
        $region29: #{tpu_custom_call.1} parent=11 // pred_check
          %p215 = pneg %p160
        $region30: #{tpu_custom_call.1} parent=11 // pred_check_branch
          %217 = sbr.rel (%p215) target = $region32
        $region31: #{tpu_custom_call.1} parent=11 // pred_region
          _
        $region32: #{tpu_custom_call.1} parent=11 // pred_fallthru
          _
      $region12: #{tpu_custom_call.1} parent=5 // pred_fallthru
        _
      %p218 = scmp.lt.s32.totalorder %s15, 2
      // Predicated region
      $region33: #{tpu_custom_call.1} parent=5 // pred_check
        %p219 = pneg %p218
      $region34: #{tpu_custom_call.1} parent=5 // pred_check_branch
        %221 = sbr.rel (%p219) target = $region36
      $region35: #{tpu_custom_call.1} parent=5 // pred_region
        // Predicated region
        $region37: #{tpu_custom_call.1} parent=35 // pred_check
          %p222 = pneg %p49
        $region38: #{tpu_custom_call.1} parent=35 // pred_check_branch
          %224 = sbr.rel (%p222) target = $region40
        $region39: #{tpu_custom_call.1} parent=35 // pred_region
          %s225 = smul.u32 2, %s23
          %p226 = scmp.lt.s32.totalorder %s22, 1
          %s227 = scalar_select %p226, %s22, 1
          %p228 = scmp.lt.s32.totalorder %s225, 1
          %s229 = scalar_select %p228, %s225, 1
          %s230 = smul.addr %s227, 2
          %s231 = sadd.s32 %s229, %s230
          %s232 = smul.addr %s231, 4
          %s233 = scalar_lea.vmem %s0, %s232
          %s234 = smul.u32 2, %s23
        $region40: #{tpu_custom_call.1} parent=35 // pred_fallthru
          _
      $region36: #{tpu_custom_call.1} parent=5 // pred_fallthru
        _
      %p235 = scmp.le.s32.totalorder 1, %s15
      %p236 = scmp.lt.s32.totalorder %s15, 3
      %p237 = pnand %p235, %p236
      %p238 = pneg %p237
      // Predicated region
      $region41: #{tpu_custom_call.1} parent=5 // pred_check
        _
      $region42: #{tpu_custom_call.1} parent=5 // pred_check_branch
        %240 = sbr.rel (%p237) target = $region44
      $region43: #{tpu_custom_call.1} parent=5 // pred_region
        %s241 = ssub.s32 %s15, 1
        %s242 = smul.u32 2, %s25
        %p243 = scmp.lt.s32.totalorder %s24, 1
        %s244 = scalar_select %p243, %s24, 1
        %p245 = scmp.lt.s32.totalorder %s242, 1
        %s246 = scalar_select %p245, %s242, 1
        %s247 = smul.addr %s244, 2
        %s248 = sadd.s32 %s246, %s247
        %s249 = smul.addr %s248, 4
        %s250 = scalar_lea.vmem %s0, %s249
        %p251 = pneg %p55
        %p252 = pneg %p52
        %p253 = pneg %p76
        %p254 = pneg %p73
        %p255 = pneg %p97
        %p256 = pneg %p94
        %p257 = pneg %p118
        %p258 = pneg %p115
        %p259 = pneg %p139
        %p260 = pneg %p136
        %p261 = pneg %p160
        %p262 = pneg %p157
        %p263 = pneg %p188
        %p264 = pneg %p185
        %s265 = sand.u32 %s175, 1
        %s266 = scalar_lea.sflag [#allocation3], %s265
        %s267 = sand.u32 %s175, 1
        %s268 = smul.addr %s267, 16
        %s269 = scalar_lea.vmem [#allocation2], %s268
        %s270 = smul.u32 2, %s25
        %p271 = scmp.lt.s32.totalorder %s24, 1
        %s272 = scalar_select %p271, %s24, 1
        %p273 = scmp.lt.s32.totalorder %s270, 1
        %s274 = scalar_select %p273, %s270, 1
        %s275 = smul.addr %s272, 2
        %s276 = sadd.s32 %s274, %s275
        %s277 = smul.addr %s276, 4
        %s278 = scalar_lea.vmem %s0, %s277
        %s279 = smul.u32 2, %s25
        %s280 = smul.u32 2, %s25
        %v282 = vld [vmem:[%s278] sm:$0xff]
        %284 = vst [vmem:[#allocation1] ss:$2 sm:$0xff] %v282
        %v285 = vld.sshfl [vmem:[#allocation1] sm:$0xff pattern:$0x75316420]
        %v286 = vld.sshfl [vmem:[#allocation1 + $0x8] sm:$0xff pattern:$0x75316420]
        %v289 = vpack.c.bf16 %v285, %v285
        %v290 = vpack.c.bf16 %v286, %v286
        %v291 = vld [vmem:[%s1] sm:$0xf]
        %v292 = vld [vmem:[%s1 + $0x4] sm:$0xf]
        %v293 = vld [vmem:[%s2] sm:$0xff]
        %v294 = vld [vmem:[%s2 + $0x8] sm:$0xff]
        %296 = vset.pattern.permute.xlu0 0
        %297 = vperm.xlu0 %296, %v293
        %v298 = vpop.permute.xlu0 %297
        %301 = vset.pattern.permute.xlu0 0
        %302 = vperm.xlu0 %301, %v294
        %v303 = vpop.permute.xlu0 %302
        %v307 = vunpack.c.l.b16 %v291
        %v308 = vunpack.c.l.b16 %v292
        %v309 = vpack.c.b16 %v308, %v307
        %vm310 = vcmask 31744
        %v312 = vsel %vm310, %v309, 0
        %vm314 = vcmask 1041408
        %v316 = vsel %vm314, %v289, 0
        %v319 = vsel %vm314, %v290, 0
        %321 = vmatpush.bf16.msra.mxu0 0
        %322 = vmatpush.bf16.msra.mxu0 0
        %323 = vmatpush.bf16.msra.mxu0 0
        %324 = vmatpush.bf16.msra.mxu0 0
        %325 = vmatpush.bf16.msra.mxu0 0
        %326 = vmatpush.bf16.msra.mxu0 0
        %327 = vmatpush.bf16.msra.mxu0 0
        %328 = vmatpush.bf16.msra.mxu0 %v316
        %329 = vmatmul.bf16.gmra.mxu0 %v312
        %v330 = vpop.f32.mrf.mxu0
        %v331 = vadd.f32 %v298, %v330
        %v332 = vpop.f32.mrf.mxu0
        %v333 = vadd.f32 %v303, %v332
        %334 = vdwg.mxu0
        %335 = vmatpush.bf16.msra.mxu0 0
        %336 = vmatpush.bf16.msra.mxu0 0
        %337 = vmatpush.bf16.msra.mxu0 0
        %338 = vmatpush.bf16.msra.mxu0 0
        %339 = vmatpush.bf16.msra.mxu0 0
        %340 = vmatpush.bf16.msra.mxu0 0
        %341 = vmatpush.bf16.msra.mxu0 0
        %342 = vmatpush.bf16.msra.mxu0 %v319
        %343 = vmatmul.bf16.gmra.mxu0 %v312
        %v344 = vpop.f32.mrf.mxu0
        %v345 = vadd.f32 %v298, %v344
        %v346 = vpop.f32.mrf.mxu0
        %v347 = vadd.f32 %v303, %v346
        %348 = vdwg.mxu0
        %v349 = vmul.f32 %v331, 0.5
        %v350 = vmul.f32 %v345, 0.5
        %v351 = vmul.f32 %v333, 0.5
        %v352 = vmul.f32 %v347, 0.5
        %v353 = vmul.f32 %v331, 0.044715
        %v354 = vmul.f32 %v345, 0.044715
        %v355 = vmul.f32 %v333, 0.044715
        %v356 = vmul.f32 %v347, 0.044715
        %v357 = vmul.f32 %v353, %v331
        %v358 = vmul.f32 %v354, %v345
        %v359 = vmul.f32 %v355, %v333
        %v360 = vmul.f32 %v356, %v347
        %v361 = vmul.f32 %v357, %v331
        %v362 = vmul.f32 %v358, %v345
        %v363 = vmul.f32 %v359, %v333
        %v364 = vmul.f32 %v360, %v347
        %v365 = vadd.f32 %v331, %v361
        %v366 = vadd.f32 %v345, %v362
        %v367 = vadd.f32 %v333, %v363
        %v368 = vadd.f32 %v347, %v364
        %v369 = vmul.f32 %v365, 0.7978846
        %v370 = vmul.f32 %v366, 0.7978846
        %v371 = vmul.f32 %v367, 0.7978846
        %v372 = vmul.f32 %v368, 0.7978846
        %v373 = vtanh.pop %v369
        %v374 = vtanh.pop %v370
        %v375 = vtanh.pop %v371
        %v376 = vtanh.pop %v372
        %v377 = vadd.f32 %v373, 1.0
        %v378 = vadd.f32 %v374, 1.0
        %v379 = vadd.f32 %v375, 1.0
        %v380 = vadd.f32 %v376, 1.0
        %v381 = vmul.f32 %v349, %v377
        %v382 = vmul.f32 %v350, %v378
        %v383 = vmul.f32 %v351, %v379
        %v384 = vmul.f32 %v352, %v380
        %v385 = vld [vmem:[%s3] sm:$0xf]
        %v386 = vpack.c.bf16 %v383, %v381
        %v387 = vpack.c.bf16 %v384, %v382
        %v388 = vld [vmem:[%s4] sm:$0xf]
        %v390 = vsel %vm310, %v388, 0
        %392 = vmatpush.bf16.msra.mxu0 0
        %393 = vmatpush.bf16.msra.mxu0 0
        %394 = vmatpush.bf16.msra.mxu0 0
        %395 = vmatpush.bf16.msra.mxu0 0
        %396 = vmatpush.bf16.msra.mxu0 0
        %397 = vmatpush.bf16.msra.mxu0 0
        %398 = vmatpush.bf16.msra.mxu0 0
        %399 = vmatpush.bf16.msra.mxu0 %v316
        %400 = vmatmul.bf16.gmra.mxu0 %v390
        %v401 = vpop.f32.mrf.mxu0
        %v402 = vadd.f32 0.0, %v401
        %v403 = vpop.f32.mrf.mxu0
        %404 = vdwg.mxu0
        %405 = vmatpush.bf16.msra.mxu0 0
        %406 = vmatpush.bf16.msra.mxu0 0
        %407 = vmatpush.bf16.msra.mxu0 0
        %408 = vmatpush.bf16.msra.mxu0 0
        %409 = vmatpush.bf16.msra.mxu0 0
        %410 = vmatpush.bf16.msra.mxu0 0
        %411 = vmatpush.bf16.msra.mxu0 0
        %412 = vmatpush.bf16.msra.mxu0 %v319
        %413 = vmatmul.bf16.gmra.mxu0 %v390
        %v414 = vpop.f32.mrf.mxu0
        %v415 = vadd.f32 0.0, %v414
        %v416 = vpop.f32.mrf.mxu0
        %417 = vdwg.mxu0
        %vm418 = vcmask 130048
        %v420 = vsel %vm418, %v385, 0
        %422 = vmatpush.bf16.msra.mxu0 0
        %423 = vmatpush.bf16.msra.mxu0 0
        %424 = vmatpush.bf16.msra.mxu0 0
        %425 = vmatpush.bf16.msra.mxu0 0
        %426 = vmatpush.bf16.msra.mxu0 0
        %427 = vmatpush.bf16.msra.mxu0 0
        %428 = vmatpush.bf16.msra.mxu0 0
        %429 = vmatpush.bf16.msra.mxu0 %v386
        %430 = vmatmul.bf16.gmra.mxu0 %v420
        %v431 = vpop.f32.mrf.mxu0
        %v432 = vadd.f32 %v402, %v431
        %v433 = vpop.f32.mrf.mxu0
        %434 = vdwg.mxu0
        %435 = vmatpush.bf16.msra.mxu0 0
        %436 = vmatpush.bf16.msra.mxu0 0
        %437 = vmatpush.bf16.msra.mxu0 0
        %438 = vmatpush.bf16.msra.mxu0 0
        %439 = vmatpush.bf16.msra.mxu0 0
        %440 = vmatpush.bf16.msra.mxu0 0
        %441 = vmatpush.bf16.msra.mxu0 0
        %442 = vmatpush.bf16.msra.mxu0 %v387
        %443 = vmatmul.bf16.gmra.mxu0 %v420
        %v444 = vpop.f32.mrf.mxu0
        %v445 = vadd.f32 %v415, %v444
        %v446 = vpop.f32.mrf.mxu0
        %447 = vdwg.mxu0
        %v448 = vld [vmem:[%s5] sm:$0xff]
        %450 = vset.pattern.permute.xlu0 0
        %451 = vperm.xlu0 %450, %v448
        %v452 = vpop.permute.xlu0 %451
        %v454 = vadd.f32 %v432, %v452
        %v455 = vadd.f32 %v445, %v452
        %456 = vst [vmem:[%s269] sm:$0xff] %v454
        %457 = vst [vmem:[%s269 + $0x8] sm:$0xff] %v455
        %s458 = sand.u32 %s175, 1
        %s459 = scalar_lea.sflag [#allocation3], %s458
        %s460 = sand.u32 %s175, 1
        %s461 = smul.addr %s460, 16
        %s462 = scalar_lea.vmem [#allocation2], %s461
        // Predicated region
        $region45: #{tpu_custom_call.1} parent=43 // pred_check
          %p463 = pneg %p185
        $region46: #{tpu_custom_call.1} parent=43 // pred_check_branch
          %465 = sbr.rel (%p463) target = $region48
        $region47: #{tpu_custom_call.1} parent=43 // pred_region
          %s466 = smul.u32 2, %s25
          %468 = vsyncadd %s459, 0
          %s469 = smul.addr %s24, 2
          %s470 = sadd.s32 %s466, %s469
          %s471 = smul.addr %s470, 8
          %s472 = scalar_lea.hbm %s6, %s471
          %s474 = sshll.u32 %s462, 4
          %s475 = int_to_ptr.vmem [resolvable:$true] %s474
          %s476 = sshll.u32 %s472, 4
          %s477 = int_to_ptr.hbm [resolvable:$true] %s476
          %479 = dma.vmem_to_hbm [thread:$0]  %s475, 256, %s477, %s459
        $region48: #{tpu_custom_call.1} parent=43 // pred_fallthru
          _
      $region44: #{tpu_custom_call.1} parent=5 // pred_fallthru
        _
      %p480 = scmp.le.s32.totalorder 2, %s15
      // Predicated region
      $region49: #{tpu_custom_call.1} parent=5 // pred_check
        %p481 = pneg %p480
      $region50: #{tpu_custom_call.1} parent=5 // pred_check_branch
        %483 = sbr.rel (%p481) target = $region52
      $region51: #{tpu_custom_call.1} parent=5 // pred_region
        %s484 = ssub.s32 %s15, 2
        // Predicated region
        $region53: #{tpu_custom_call.1} parent=51 // pred_check
          %p485 = pneg %p191
        $region54: #{tpu_custom_call.1} parent=51 // pred_check_branch
          %487 = sbr.rel (%p485) target = $region56
        $region55: #{tpu_custom_call.1} parent=51 // pred_region
          %s488 = sand.u32 %s176, 1
          %s489 = scalar_lea.sflag [#allocation3], %s488
          %s490 = sand.u32 %s176, 1
          %s491 = smul.addr %s490, 16
          %s492 = scalar_lea.vmem [#allocation2], %s491
          %494 = dma.done %s489, 256
        $region56: #{tpu_custom_call.1} parent=51 // pred_fallthru
          _
      $region52: #{tpu_custom_call.1} parent=5 // pred_fallthru
        _
    $region6: #{tpu_custom_call.1} parent=1 // loop_footer
      %s19 = sadd.s32 1, %s15
    $region7: #{tpu_custom_call.1} parent=1 // loop_footer_branch
      %14 = sbr.rel target = $region3
    $region8: #{tpu_custom_call.1} parent=1 // loop_exit
      _
    %495 = vsyncpa [#allocation3], 1
    %s496 = scalar_lea.sflag [#allocation3], 1
    %497 = vsyncpa %s496, 1

</llo_original>
